<compile_context>
chip_gen: v7x
topology: tpu7x:2x2x1
jax: 0.10.0
libtpu: 0.0.40
codegen_flags: <defaults>
</compile_context>

<pallas_src>
import functools

import jax
import jax.numpy as jnp
from jax import lax
from jax.experimental import pallas as pl
from jax.experimental.pallas import tpu as pltpu


def _attn_kernel(q_ref, k_ref, v_ref, x_ref, gamma_ref, out_ref,
                 m_ref, acc_ref, *, exp_bf16: bool):
    """One (batch, q-tile, kv-tile) grid step of online-softmax attention.

    q_ref : (1, C8p, TQ)  bf16   query tile (channels on sublanes, pixels on lanes)
    k_ref : (1, C8p, TKV) bf16   key tile
    v_ref : (1, Cv,  TKV) bf16   value tile; rows [0, C) = V, row C = ones, rest 0
    x_ref : (1, C,   TQ)  f32    residual tile
    out_ref: (1, C,  TQ)  f32
    m_ref : (1, TQ)       f32    running row-max (lane-dense along queries)
    acc_ref: (Cv, TQ)     f32    augmented accumulator; row C = softmax denominator
    """
    j = pl.program_id(2)
    nj = pl.num_programs(2)
    C = out_ref.shape[1]

    @pl.when(j == 0)
    def _():
        m_ref[...] = jnp.full_like(m_ref, -jnp.inf)
        acc_ref[...] = jnp.zeros_like(acc_ref)

    q = q_ref[0]                                     # (C8p, TQ)  bf16
    k = k_ref[0]                                     # (C8p, TKV) bf16
    v = v_ref[0]                                     # (Cv,  TKV) bf16

    # e[kv, t] = <k_kv, q_t>  — queries stay on the lane axis end to end.
    e = lax.dot_general(k, q, (((0,), (0,)), ((), ())),
                        preferred_element_type=jnp.float32)          # (TKV, TQ) f32

    m_prev = m_ref[...]                                              # (1, TQ)
    m_new = jnp.maximum(m_prev, jnp.max(e, axis=0, keepdims=True))   # (1, TQ)
    alpha = jnp.exp(m_prev - m_new)                                  # (1, TQ) f32

    if exp_bf16:
        # v6e / v7x: the EUP (not the MXU) saturates first; bf16 exp ~2x faster
        # and halves the footprint of p.
        p = jnp.exp((e - m_new).astype(jnp.bfloat16))                # (TKV, TQ) bf16
    else:
        # v5e and older: no bf16 VPU/EUP path — keep softmax math in f32.
        p = jnp.exp(e - m_new).astype(jnp.bfloat16)                  # (TKV, TQ) bf16

    # o_aug[c, t] = sum_kv v_aug[c, kv] * p[kv, t]; row C collects the row sums.
    o = lax.dot_general(v, p, (((1,), (0,)), ((), ())),
                        preferred_element_type=jnp.float32)          # (Cv, TQ) f32

    acc_ref[...] = alpha * acc_ref[...] + o
    m_ref[...] = m_new

    @pl.when(j == nj - 1)
    def _():
        l_row = acc_ref[pl.ds(C, 1), :]                              # (1, TQ) denom
        inv = pl.reciprocal(l_row, approx=True)
        g = gamma_ref[0]
        out_ref[0] = g * (acc_ref[pl.ds(0, C), :] * inv) + x_ref[0]


def _round_up(x, m):
    return (x + m - 1) // m * m


def _pick_tile(n, prefs=(512, 256, 128)):
    for c in prefs:
        if n % c == 0:
            return c
    return n   # small / odd N: use the full extent (valid full-dim block)


def self_attn_pallas(x_nchw, wq, bq, wk, bk, wv, bv, gamma, *, tq=None, tkv=None):
    """SAGAN self-attention forward.

    x_nchw: (B, C, W, H) f32.  1x1-conv weights stored as (in, out):
    wq/wk: (C, C//8), wv: (C, C); biases bq/bk: (1, C//8), bv: (1, C); gamma: (1,).
    """
    B, C, W, H = x_nchw.shape
    N = W * H
    C8 = wq.shape[1]

    # ---- generation-aware knobs --------------------------------------------
    kind = ""
    try:
        kind = jax.devices()[0].device_kind.lower()
    except Exception:
        pass
    old_gen = any(("v%d" % v) in kind for v in (2, 3, 4, 5))
    exp_bf16 = not old_gen                       # bf16 EUP exists on v6e / v7x

    try:
        phys_vmem = int(pltpu.get_tpu_info().vmem_capacity_bytes)
    except Exception:
        phys_vmem = (64 if "v7" in kind else 128) * 1024 * 1024
    # Leave compiler/internal-scratch headroom: ~48 MiB cap on v7x, ~112 MiB on v5e/v6e.
    vmem_cap = max(32 * 1024 * 1024, phys_vmem - 16 * 1024 * 1024)

    # ---- tile sizes ---------------------------------------------------------
    if tq is None:
        tq = _pick_tile(N)
    if tkv is None:
        tkv = _pick_tile(N)
    assert N % tq == 0 and N % tkv == 0, (N, tq, tkv)

    C8p = _round_up(C8, 16)       # bf16 sublane-aligned q/k channel count
    Cv = _round_up(C + 1, 16)     # value channels + ones row, sublane-aligned

    f32, bf16 = jnp.float32, jnp.bfloat16
    x_cn = x_nchw.reshape(B, C, N)            # NCHW -> (B, C, N): free reshape

    # ---- hoisted QKV projection (1x1 convs == channel matmuls), f32 in XLA --
    q = jnp.einsum('ck,bcn->bkn', wq, x_cn) + bq.reshape(1, C8, 1)   # (B, C8, N)
    k = jnp.einsum('ck,bcn->bkn', wk, x_cn) + bk.reshape(1, C8, 1)   # (B, C8, N)
    v = jnp.einsum('ck,bcn->bkn', wv, x_cn) + bv.reshape(1, C, 1)    # (B, C,  N)

    q_p = jnp.zeros((B, C8p, N), bf16).at[:, :C8, :].set(q.astype(bf16))
    k_p = jnp.zeros((B, C8p, N), bf16).at[:, :C8, :].set(k.astype(bf16))
    v_aug = jnp.zeros((B, Cv, N), bf16).at[:, :C, :].set(v.astype(bf16))
    v_aug = v_aug.at[:, C, :].set(jnp.ones((B, N), bf16))   # ones row -> denom

    gi, gj = N // tq, N // tkv

    # Rough VMEM budget: double-buffered blocks + scratch + in-kernel temps.
    est = (2 * C8p * tq * 2 + 2 * C8p * tkv * 2 + 2 * Cv * tkv * 2
           + 2 * C * tq * 4 + 2 * C * tq * 4
           + Cv * tq * 4 + 8 * tq * 4
           + 6 * tkv * tq)
    vmem_limit = int(min(vmem_cap, max(32 * 1024 * 1024, 2 * est)))

    kernel = functools.partial(_attn_kernel, exp_bf16=exp_bf16)

    out_cn = pl.pallas_call(
        kernel,
        out_shape=jax.ShapeDtypeStruct((B, C, N), f32),
        grid_spec=pltpu.PrefetchScalarGridSpec(
            num_scalar_prefetch=0,
            grid=(B, gi, gj),
            in_specs=[
                pl.BlockSpec((1, C8p, tq), lambda b, i, j: (b, 0, i)),    # q tile
                pl.BlockSpec((1, C8p, tkv), lambda b, i, j: (b, 0, j)),   # k tile
                pl.BlockSpec((1, Cv, tkv), lambda b, i, j: (b, 0, j)),    # v (+ones)
                pl.BlockSpec((1, C, tq), lambda b, i, j: (b, 0, i)),      # x residual
                pl.BlockSpec(memory_space=pltpu.MemorySpace.SMEM),        # gamma (1,)
            ],
            out_specs=pl.BlockSpec((1, C, tq), lambda b, i, j: (b, 0, i)),
            scratch_shapes=[
                pltpu.VMEM((1, tq), f32),     # running max (lane-dense over queries)
                pltpu.VMEM((Cv, tq), f32),    # augmented accumulator (+ denom row)
            ],
        ),
        compiler_params=pltpu.CompilerParams(
            # KV axis carries the m/acc scratch -> must stay "arbitrary" and last.
            dimension_semantics=("parallel", "parallel", "arbitrary"),
            vmem_limit_bytes=vmem_limit,
        ),
    )(q_p, k_p, v_aug, x_cn, gamma)

    return out_cn.reshape(B, C, W, H)


def self_attn_ref(x_nchw, wq, bq, wk, bk, wv, bv, gamma):
    """Pure-JAX reference mirroring the PyTorch forward exactly (f32)."""
    B, C, W, H = x_nchw.shape
    N = W * H
    x_cn = x_nchw.reshape(B, C, N)
    q = jnp.einsum('bcn,ck->bkn', x_cn, wq) + bq.T[None]
    k = jnp.einsum('bcn,ck->bkn', x_cn, wk) + bk.T[None]
    v = jnp.einsum('bcn,ck->bkn', x_cn, wv) + bv.T[None]
    energy = jnp.einsum('bkn,bkm->bnm', q, k)                  # (B, N, N)
    attn = jax.nn.softmax(energy, axis=-1)
    out = jnp.einsum('bcm,bnm->bcn', v, attn)
    out = out.reshape(B, C, W, H)
    return gamma[0] * out + x_nchw


if __name__ == "__main__":
    key = jax.random.PRNGKey(0)
    B, C, W, H = 2, 64, 16, 16        # N = 256
    C8 = C // 8

    k_x, k_wq, k_bq, k_wk, k_bk, k_wv, k_bv = jax.random.split(key, 7)
    x = jax.random.normal(k_x, (B, C, W, H), dtype=jnp.float32)

    wq = jax.random.normal(k_wq, (C, C8), dtype=jnp.float32) * 0.1
    bq = jax.random.normal(k_bq, (1, C8), dtype=jnp.float32) * 0.1
    wk = jax.random.normal(k_wk, (C, C8), dtype=jnp.float32) * 0.1
    bk = jax.random.normal(k_bk, (1, C8), dtype=jnp.float32) * 0.1
    wv = jax.random.normal(k_wv, (C, C), dtype=jnp.float32) * 0.1
    bv = jax.random.normal(k_bv, (1, C), dtype=jnp.float32) * 0.1

    # Module init (gamma = 0): output must equal the input exactly.
    # Use tq=tkv=128 to exercise both query tiling and the online-softmax KV loop.
    gamma0 = jnp.zeros((1,), dtype=jnp.float32)
    out0 = jax.block_until_ready(
        self_attn_pallas(x, wq, bq, wk, bk, wv, bv, gamma0, tq=128, tkv=128))
    assert out0.shape == (B, C, W, H)
    assert jnp.allclose(out0, x, atol=1e-5), float(jnp.max(jnp.abs(out0 - x)))

    # Full attention path with nonzero gamma vs f32 reference.
    gamma1 = jnp.array([0.25], dtype=jnp.float32)
    out_r = self_attn_ref(x, wq, bq, wk, bk, wv, bv, gamma1)

    out_k = jax.block_until_ready(
        self_attn_pallas(x, wq, bq, wk, bk, wv, bv, gamma1, tq=128, tkv=128))
    max_err = float(jnp.max(jnp.abs(out_k - out_r)))
    assert jnp.allclose(out_k, out_r, atol=3e-2, rtol=3e-2), max_err

    # Default (auto-picked) tile sizes: single KV tile path (j==0 is also last).
    out_k2 = jax.block_until_ready(
        self_attn_pallas(x, wq, bq, wk, bk, wv, bv, gamma1))
    max_err2 = float(jnp.max(jnp.abs(out_k2 - out_r)))
    assert jnp.allclose(out_k2, out_r, atol=3e-2, rtol=3e-2), max_err2

    print("KERNEL_OK")
</pallas_src>

<mosaic_0001>
module attributes {stable_mosaic.version = 11 : i64} {
  func.func @_attn_kernel(%arg0: i32, %arg1: i32, %arg2: i32, %arg3: memref<1x16x128xbf16, #tpu.memory_space<vmem>>, %arg4: memref<1x16x128xbf16, #tpu.memory_space<vmem>>, %arg5: memref<1x80x128xbf16, #tpu.memory_space<vmem>>, %arg6: memref<1x64x128xf32, #tpu.memory_space<vmem>>, %arg7: memref<1xf32, #tpu.memory_space<smem>>, %arg8: memref<1x64x128xf32, #tpu.memory_space<vmem>>, %arg9: memref<1x128xf32, #tpu.memory_space<vmem>>, %arg10: memref<80x128xf32, #tpu.memory_space<vmem>>) attributes {dimension_semantics = [#tpu.dimension_semantics<parallel>, #tpu.dimension_semantics<parallel>, #tpu.dimension_semantics<arbitrary>], iteration_bounds = array<i64: 2, 2, 2>, scalar_prefetch = 0 : i64, scratch_operands = 2 : i64, tpu.core_type = #tpu.core_type<tc>, window_params = [{transform_indices = @transform_0, window_bounds = array<i64: 1, 16, 128>}, {transform_indices = @transform_1, window_bounds = array<i64: 1, 16, 128>}, {transform_indices = @transform_2, window_bounds = array<i64: 1, 80, 128>}, {transform_indices = @transform_3, window_bounds = array<i64: 1, 64, 128>}, {transform_indices = @transform_4, window_bounds = array<i64: 1>}, {transform_indices = @transform_5, window_bounds = array<i64: 1, 64, 128>}]} {
    %c0_i32 = arith.constant 0 : i32
    %0 = arith.cmpi eq, %arg2, %c0_i32 : i32
    %1 = arith.extui %0 : i1 to i32
    %c0_i32_0 = arith.constant 0 : i32
    %2 = arith.cmpi ne, %1, %c0_i32_0 : i32
    scf.if %2 {
      %cst_20 = arith.constant 0xFF800000 : f32
      %30 = vector.broadcast %cst_20 : f32 to vector<1x128xf32>
      %c0_21 = arith.constant 0 : index
      %c0_22 = arith.constant 0 : index
      %31 = vector.load %arg9[%c0_21, %c0_22] : memref<1x128xf32, #tpu.memory_space<vmem>>, vector<1x128xf32>
      tpu.vector_store %arg9[%c0_21, %c0_22], %30 {strides = array<i32>} : memref<1x128xf32, #tpu.memory_space<vmem>>, vector<1x128xf32>,
      %cst_23 = arith.constant 0.000000e+00 : f32
      %32 = vector.broadcast %cst_23 : f32 to vector<80x128xf32>
      %c0_24 = arith.constant 0 : index
      %c0_25 = arith.constant 0 : index
      %33 = vector.load %arg10[%c0_24, %c0_25] : memref<80x128xf32, #tpu.memory_space<vmem>>, vector<80x128xf32>
      tpu.vector_store %arg10[%c0_24, %c0_25], %32 {strides = array<i32>} : memref<80x128xf32, #tpu.memory_space<vmem>>, vector<80x128xf32>,
    } else {
    }
    %c0 = arith.constant 0 : index
    %c0_1 = arith.constant 0 : index
    %c0_2 = arith.constant 0 : index
    %3 = vector.load %arg3[%c0, %c0_1, %c0_2] : memref<1x16x128xbf16, #tpu.memory_space<vmem>>, vector<1x16x128xbf16>
    %4 = vector.shape_cast %3 : vector<1x16x128xbf16> to vector<16x128xbf16>
    %c0_3 = arith.constant 0 : index
    %c0_4 = arith.constant 0 : index
    %c0_5 = arith.constant 0 : index
    %5 = vector.load %arg4[%c0_3, %c0_4, %c0_5] : memref<1x16x128xbf16, #tpu.memory_space<vmem>>, vector<1x16x128xbf16>
    %6 = vector.shape_cast %5 : vector<1x16x128xbf16> to vector<16x128xbf16>
    %c0_6 = arith.constant 0 : index
    %c0_7 = arith.constant 0 : index
    %c0_8 = arith.constant 0 : index
    %7 = vector.load %arg5[%c0_6, %c0_7, %c0_8] : memref<1x80x128xbf16, #tpu.memory_space<vmem>>, vector<1x80x128xbf16>
    %8 = vector.shape_cast %7 : vector<1x80x128xbf16> to vector<80x128xbf16>
    %cst = arith.constant dense<0.000000e+00> : vector<128x128xf32>
    %9 = tpu.matmul %6, %4, %cst {dimension_numbers = #tpu.dot_dimension_numbers<[0], [0], [1], [1], [0, 1, 1, 1], [], []>} : vector<16x128xbf16>, vector<16x128xbf16>, vector<128x128xf32> -> vector<128x128xf32>
    %c0_9 = arith.constant 0 : index
    %c0_10 = arith.constant 0 : index
    %10 = vector.load %arg9[%c0_9, %c0_10] : memref<1x128xf32, #tpu.memory_space<vmem>>, vector<1x128xf32>
    %cst_11 = arith.constant dense<0xFF800000> : vector<128xf32>
    %11 = vector.multi_reduction <maximumf>, %9, %cst_11 [0] : vector<128x128xf32> to vector<128xf32>
    %12 = vector.shape_cast %11 : vector<128xf32> to vector<1x128xf32>
    %13 = arith.maximumf %10, %12 : vector<1x128xf32>
    %14 = arith.subf %10, %13 : vector<1x128xf32>
    %15 = math.exp %14 : vector<1x128xf32>
    %16 = vector.broadcast %13 : vector<1x128xf32> to vector<128x128xf32>
    %17 = arith.subf %9, %16 : vector<128x128xf32>
    %18 = arith.truncf %17 : vector<128x128xf32> to vector<128x128xbf16>
    %19 = math.exp %18 : vector<128x128xbf16>
    %cst_12 = arith.constant dense<0.000000e+00> : vector<80x128xf32>
    %20 = tpu.matmul %8, %19, %cst_12 {dimension_numbers = #tpu.dot_dimension_numbers<[1], [0], [0], [1], [0, 0, 1, 1], [], []>} : vector<80x128xbf16>, vector<128x128xbf16>, vector<80x128xf32> -> vector<80x128xf32>
    %c0_13 = arith.constant 0 : index
    %c0_14 = arith.constant 0 : index
    %21 = vector.load %arg10[%c0_13, %c0_14] : memref<80x128xf32, #tpu.memory_space<vmem>>, vector<80x128xf32>
    %22 = vector.broadcast %15 : vector<1x128xf32> to vector<80x128xf32>
    %23 = arith.mulf %22, %21 : vector<80x128xf32>
    %24 = arith.addf %23, %20 : vector<80x128xf32>
    %c0_15 = arith.constant 0 : index
    %c0_16 = arith.constant 0 : index
    %25 = vector.load %arg10[%c0_15, %c0_16] : memref<80x128xf32, #tpu.memory_space<vmem>>, vector<80x128xf32>
    tpu.vector_store %arg10[%c0_15, %c0_16], %24 {strides = array<i32>} : memref<80x128xf32, #tpu.memory_space<vmem>>, vector<80x128xf32>,
    %c0_17 = arith.constant 0 : index
    %c0_18 = arith.constant 0 : index
    %26 = vector.load %arg9[%c0_17, %c0_18] : memref<1x128xf32, #tpu.memory_space<vmem>>, vector<1x128xf32>
    tpu.vector_store %arg9[%c0_17, %c0_18], %13 {strides = array<i32>} : memref<1x128xf32, #tpu.memory_space<vmem>>, vector<1x128xf32>,
    %c1_i32 = arith.constant 1 : i32
    %27 = arith.cmpi eq, %arg2, %c1_i32 : i32
    %28 = arith.extui %27 : i1 to i32
    %c0_i32_19 = arith.constant 0 : i32
    %29 = arith.cmpi ne, %28, %c0_i32_19 : i32
    scf.if %29 {
      %c64 = arith.constant 64 : index
      %c0_20 = arith.constant 0 : index
      %30 = vector.load %arg10[%c64, %c0_20] : memref<80x128xf32, #tpu.memory_space<vmem>>, vector<1x128xf32>
      %31 = tpu.reciprocal %30 {approx = true} : vector<1x128xf32> -> vector<1x128xf32>
      %c0_21 = arith.constant 0 : index
      %32 = memref.load %arg7[%c0_21] : memref<1xf32, #tpu.memory_space<smem>>
      %c0_22 = arith.constant 0 : index
      %c0_23 = arith.constant 0 : index
      %33 = vector.load %arg10[%c0_22, %c0_23] : memref<80x128xf32, #tpu.memory_space<vmem>>, vector<64x128xf32>
      %34 = vector.broadcast %31 : vector<1x128xf32> to vector<64x128xf32>
      %35 = arith.mulf %33, %34 : vector<64x128xf32>
      %36 = vector.broadcast %32 : f32 to vector<64x128xf32>
      %37 = arith.mulf %36, %35 : vector<64x128xf32>
      %c0_24 = arith.constant 0 : index
      %c0_25 = arith.constant 0 : index
      %c0_26 = arith.constant 0 : index
      %38 = vector.load %arg6[%c0_24, %c0_25, %c0_26] : memref<1x64x128xf32, #tpu.memory_space<vmem>>, vector<1x64x128xf32>
      %39 = vector.shape_cast %38 : vector<1x64x128xf32> to vector<64x128xf32>
      %40 = arith.addf %37, %39 : vector<64x128xf32>
      %c0_27 = arith.constant 0 : index
      %c0_28 = arith.constant 0 : index
      %c0_29 = arith.constant 0 : index
      %41 = vector.load %arg8[%c0_27, %c0_28, %c0_29] : memref<1x64x128xf32, #tpu.memory_space<vmem>>, vector<1x64x128xf32>
      %42 = vector.shape_cast %41 : vector<1x64x128xf32> to vector<64x128xf32>
      %43 = vector.shape_cast %40 : vector<64x128xf32> to vector<1x64x128xf32>
      tpu.vector_store %arg8[%c0_27, %c0_28, %c0_29], %43 {strides = array<i32>} : memref<1x64x128xf32, #tpu.memory_space<vmem>>, vector<1x64x128xf32>,
    } else {
    }
    return
  }
  func.func @transform_0(%arg0: i32, %arg1: i32, %arg2: i32) -> (i32, i32, i32) {
    %c0_i32 = arith.constant 0 : i32
    %c0_i32_0 = arith.constant 0 : i32
    return %arg0, %c0_i32, %arg1 : i32, i32, i32
  }
  func.func @transform_1(%arg0: i32, %arg1: i32, %arg2: i32) -> (i32, i32, i32) {
    %c0_i32 = arith.constant 0 : i32
    %c0_i32_0 = arith.constant 0 : i32
    return %arg0, %c0_i32, %arg2 : i32, i32, i32
  }
  func.func @transform_2(%arg0: i32, %arg1: i32, %arg2: i32) -> (i32, i32, i32) {
    %c0_i32 = arith.constant 0 : i32
    %c0_i32_0 = arith.constant 0 : i32
    return %arg0, %c0_i32, %arg2 : i32, i32, i32
  }
  func.func @transform_3(%arg0: i32, %arg1: i32, %arg2: i32) -> (i32, i32, i32) {
    %c0_i32 = arith.constant 0 : i32
    %c0_i32_0 = arith.constant 0 : i32
    return %arg0, %c0_i32, %arg1 : i32, i32, i32
  }
  func.func @transform_4(%arg0: i32, %arg1: i32, %arg2: i32) -> i32 {
    %c0_i32 = arith.constant 0 : i32
    %c0_i32_0 = arith.constant 0 : i32
    return %c0_i32 : i32
  }
  func.func @transform_5(%arg0: i32, %arg1: i32, %arg2: i32) -> (i32, i32, i32) {
    %c0_i32 = arith.constant 0 : i32
    %c0_i32_0 = arith.constant 0 : i32
    return %arg0, %c0_i32, %arg1 : i32, i32, i32
  }
}

</mosaic_0001>

<llo_original>
// kernel: tpu_custom_call.1
$region0: #{tpu_custom_call.1}
  #allocation0 [shape = 'u32[]', space=smem, size = 0x4, offset = 0x4, fixed_abs, tag = 'smem constant byte address 0x4 - core index']
  #allocation1 [shape = 'u32[144,128]{1,0:T(1,128)}', space=vmem, size = 0x12000, scoped, tag = 'internal scratch']
  #allocation2 [shape = 'f32[1,128]{1,0:T(1,128)}', space=vmem, size = 0x200, scoped, tag = 'scratch operand']
  #allocation3 [shape = 'f32[80,128]{1,0:T(8,128)}', space=vmem, size = 0xa000, scoped, tag = 'scratch operand']
  #allocation4 [shape = 'f32[1]{0:T(128)S(6)}', space=smem, size = 0x200, scoped, tag = 'scoped memory for tpu_custom_call.1']
  %s0 = inlined_call_operand.hbm [shape: bf16[2,16,256], index: 0, kind: input, shape index: {}]
  %s1 = inlined_call_operand.hbm [shape: bf16[2,16,256], index: 1, kind: input, shape index: {}]
  %s2 = inlined_call_operand.hbm [shape: bf16[2,80,256], index: 2, kind: input, shape index: {}]
  %s3 = inlined_call_operand.hbm [shape: f32[2,64,256], index: 3, kind: input, shape index: {}]
  %s4 = inlined_call_operand.<no memory space> [shape: f32[1], index: 4, kind: input, shape index: {}]
  %s5 = inlined_call_operand.hbm [shape: f32[2,64,256], index: 5, kind: output, shape index: {}]
  %s6 = sld [smem:[#allocation0]]
  $region77: #{tpu_custom_call.1} parent=0
    _
  %s8 = ssub.s32 1, %s6
  %s9 = scalar_select 0, %s8, %s6
  %10 = sst [smem:[#allocation4]] %s4
  $region1: #{tpu_custom_call.1} parent=0
    #allocation5 [shape = 'u8[8192]{0}', space=vmem, size = 0x2000, scoped, tag = 'input window, operand 0']
    #allocation6 [shape = 's32[2]{0}', space=sflag, size = 0x8, scoped, tag = 'scoped memory for tpu_custom_call.1']
    #allocation7 [shape = 's32[2]{0}', space=sflag, size = 0x8, scoped, tag = 'scoped memory for tpu_custom_call.1']
    #allocation8 [shape = 'u8[8192]{0}', space=vmem, size = 0x2000, scoped, tag = 'input window, operand 1']
    #allocation9 [shape = 's32[2]{0}', space=sflag, size = 0x8, scoped, tag = 'scoped memory for tpu_custom_call.1']
    #allocation10 [shape = 'u8[40960]{0}', space=vmem, size = 0xa000, scoped, tag = 'input window, operand 2']
    #allocation11 [shape = 'u8[65536]{0}', space=vmem, size = 0x10000, scoped, tag = 'input window, operand 3']
    #allocation12 [shape = 's32[2]{0}', space=sflag, size = 0x8, scoped, tag = 'scoped memory for tpu_custom_call.1']
    #allocation13 [shape = 'u8[65536]{0}', space=vmem, size = 0x10000, scoped, tag = 'output window, operand 0']
    %11 = vsyncpa [#allocation6], 0
    %s12 = scalar_lea.sflag [#allocation6], 1
    %13 = vsyncpa %s12, 0
    %14 = vsyncpa [#allocation9], 0
    %s15 = scalar_lea.sflag [#allocation9], 1
    %16 = vsyncpa %s15, 0
    %17 = vsyncpa [#allocation12], 0
    %s18 = scalar_lea.sflag [#allocation12], 1
    %19 = vsyncpa %s18, 0
    %20 = vsyncpa [#allocation7], 0
    %s21 = scalar_lea.sflag [#allocation7], 1
    %22 = vsyncpa %s21, 0
    loop: start=0, step=1, limit=10
    $region2: #{tpu_custom_call.1} parent=1 // loop_pre_header
      _
    $region3: #{tpu_custom_call.1} parent=1 // loop_header
      %s24 = sphi 0, %s28
      %p25 = scmp.ge.s32.totalorder %s24, 10
      %s31 = sphi 0, %s50
      %s32 = sphi 0, %s46
      %s33 = sphi 0, %s42
      %s34 = sphi 0, %s31
      %s35 = sphi 0, %s32
      %s36 = sphi 0, %s33
      %s37 = sphi 0, %s34
      %s38 = sphi 0, %s35
      %s39 = sphi 0, %s36
      %s55 = sphi 0, %s57
      %s58 = sphi 0, %s55
      %s59 = sphi 0, %s58
      %s75 = sphi 0, %s59
      %s83 = sphi 0, %s85
      %s86 = sphi 0, %s83
      %s87 = sphi 0, %s86
      %s103 = sphi 0, %s87
      %s111 = sphi 0, %s113
      %s114 = sphi 0, %s111
      %s115 = sphi 0, %s114
      %s131 = sphi 0, %s115
      %s139 = sphi 0, %s141
      %s142 = sphi 0, %s139
      %s143 = sphi 0, %s142
      %s159 = sphi 0, %s143
      %s163 = sphi 0, %s163
      %s165 = sphi 0, %s163
      %s166 = sphi 0, %s165
      %s180 = sphi 0, %s166
      %s188 = sphi 0, %s190
      %s191 = sphi 0, %s188
      %s192 = sphi 0, %s191
      %s208 = sphi 0, %s192
    $region4: #{tpu_custom_call.1} parent=1 // loop_header_branch
      %27 = sbr.rel (%p25) target = $region8
    $region5: #{tpu_custom_call.1} parent=1 // loop_body
      %s29 = ssub.s32 %s24, 1
      %s30 = ssub.s32 %s24, 2
      %s40 = sadd.s32 1, %s33
      %p41 = scmp.ge.s32.totalorder %s40, 2
      %s42 = scalar_select %p41, 0, %s40
      %s43 = sadd.s32 1, %s32
      %s44 = scalar_select %p41, %s43, %s32
      %p45 = scmp.ge.s32.totalorder %s44, 2
      %s46 = scalar_select %p45, 0, %s44
      %s47 = sadd.s32 1, %s31
      %s48 = scalar_select %p45, %s47, %s31
      %p49 = scmp.ge.s32.totalorder %s48, 2
      %s50 = scalar_select %p49, 0, %s48
      %s51 = ssub.s32 %s31, %s50
      %s52 = ssub.s32 %s32, %s46
      %s53 = sor.u32 %s51, %s52
      %p54 = scmp.eq.s32.totalorder %s53, 0
      %s56 = sadd.s32 %s55, 1
      %s57 = scalar_select %p54, %s55, %s56
      %p60 = pneg %p54
      %p61 = scmp.eq.s32.totalorder %s24, 7
      %p62 = por %p60, %p61
      %p63 = scmp.ne.s32.totalorder %s55, %s58
      %p64 = scmp.eq.s32.totalorder %s24, 0
      %p65 = por %p63, %p64
      %p66 = scmp.ne.s32.totalorder %s55, %s58
      %p67 = scmp.eq.s32.totalorder %s29, 7
      %p68 = por %p66, %p67
      %p69 = scmp.ne.s32.totalorder %s58, %s59
      %p70 = scmp.eq.s32.totalorder %s29, 0
      %p71 = por %p69, %p70
      %p72 = scmp.ne.s32.totalorder %s58, %s59
      %p73 = scmp.eq.s32.totalorder %s30, 7
      %p74 = por %p72, %p73
      %p76 = scmp.ne.s32.totalorder %s59, %s75
      %p77 = scmp.eq.s32.totalorder %s30, 0
      %p78 = por %p76, %p77
      %s79 = ssub.s32 %s31, %s50
      %s80 = ssub.s32 %s33, %s42
      %s81 = sor.u32 %s79, %s80
      %p82 = scmp.eq.s32.totalorder %s81, 0
      %s84 = sadd.s32 %s83, 1
      %s85 = scalar_select %p82, %s83, %s84
      %p88 = pneg %p82
      %p89 = scmp.eq.s32.totalorder %s24, 7
      %p90 = por %p88, %p89
      %p91 = scmp.ne.s32.totalorder %s83, %s86
      %p92 = scmp.eq.s32.totalorder %s24, 0
      %p93 = por %p91, %p92
      %p94 = scmp.ne.s32.totalorder %s83, %s86
      %p95 = scmp.eq.s32.totalorder %s29, 7
      %p96 = por %p94, %p95
      %p97 = scmp.ne.s32.totalorder %s86, %s87
      %p98 = scmp.eq.s32.totalorder %s29, 0
      %p99 = por %p97, %p98
      %p100 = scmp.ne.s32.totalorder %s86, %s87
      %p101 = scmp.eq.s32.totalorder %s30, 7
      %p102 = por %p100, %p101
      %p104 = scmp.ne.s32.totalorder %s87, %s103
      %p105 = scmp.eq.s32.totalorder %s30, 0
      %p106 = por %p104, %p105
      %s107 = ssub.s32 %s31, %s50
      %s108 = ssub.s32 %s33, %s42
      %s109 = sor.u32 %s107, %s108
      %p110 = scmp.eq.s32.totalorder %s109, 0
      %s112 = sadd.s32 %s111, 1
      %s113 = scalar_select %p110, %s111, %s112
      %p116 = pneg %p110
      %p117 = scmp.eq.s32.totalorder %s24, 7
      %p118 = por %p116, %p117
      %p119 = scmp.ne.s32.totalorder %s111, %s114
      %p120 = scmp.eq.s32.totalorder %s24, 0
      %p121 = por %p119, %p120
      %p122 = scmp.ne.s32.totalorder %s111, %s114
      %p123 = scmp.eq.s32.totalorder %s29, 7
      %p124 = por %p122, %p123
      %p125 = scmp.ne.s32.totalorder %s114, %s115
      %p126 = scmp.eq.s32.totalorder %s29, 0
      %p127 = por %p125, %p126
      %p128 = scmp.ne.s32.totalorder %s114, %s115
      %p129 = scmp.eq.s32.totalorder %s30, 7
      %p130 = por %p128, %p129
      %p132 = scmp.ne.s32.totalorder %s115, %s131
      %p133 = scmp.eq.s32.totalorder %s30, 0
      %p134 = por %p132, %p133
      %s135 = ssub.s32 %s31, %s50
      %s136 = ssub.s32 %s32, %s46
      %s137 = sor.u32 %s135, %s136
      %p138 = scmp.eq.s32.totalorder %s137, 0
      %s140 = sadd.s32 %s139, 1
      %s141 = scalar_select %p138, %s139, %s140
      %p144 = pneg %p138
      %p145 = scmp.eq.s32.totalorder %s24, 7
      %p146 = por %p144, %p145
      %p147 = scmp.ne.s32.totalorder %s139, %s142
      %p148 = scmp.eq.s32.totalorder %s24, 0
      %p149 = por %p147, %p148
      %p150 = scmp.ne.s32.totalorder %s139, %s142
      %p151 = scmp.eq.s32.totalorder %s29, 7
      %p152 = por %p150, %p151
      %p153 = scmp.ne.s32.totalorder %s142, %s143
      %p154 = scmp.eq.s32.totalorder %s29, 0
      %p155 = por %p153, %p154
      %p156 = scmp.ne.s32.totalorder %s142, %s143
      %p157 = scmp.eq.s32.totalorder %s30, 7
      %p158 = por %p156, %p157
      %p160 = scmp.ne.s32.totalorder %s143, %s159
      %p161 = scmp.eq.s32.totalorder %s30, 0
      %p162 = por %p160, %p161
      %s164 = sadd.s32 %s163, 1
      %p167 = scmp.eq.s32.totalorder %s24, 7
      %p168 = scmp.ne.s32.totalorder %s163, %s165
      %p169 = scmp.eq.s32.totalorder %s24, 0
      %p170 = por %p168, %p169
      %p171 = scmp.ne.s32.totalorder %s163, %s165
      %p172 = scmp.eq.s32.totalorder %s29, 7
      %p173 = por %p171, %p172
      %p174 = scmp.ne.s32.totalorder %s165, %s166
      %p175 = scmp.eq.s32.totalorder %s29, 0
      %p176 = por %p174, %p175
      %p177 = scmp.ne.s32.totalorder %s165, %s166
      %p178 = scmp.eq.s32.totalorder %s30, 7
      %p179 = por %p177, %p178
      %p181 = scmp.ne.s32.totalorder %s166, %s180
      %p182 = scmp.eq.s32.totalorder %s30, 0
      %p183 = por %p181, %p182
      %s184 = ssub.s32 %s31, %s50
      %s185 = ssub.s32 %s32, %s46
      %s186 = sor.u32 %s184, %s185
      %p187 = scmp.eq.s32.totalorder %s186, 0
      %s189 = sadd.s32 %s188, 1
      %s190 = scalar_select %p187, %s188, %s189
      %p193 = pneg %p187
      %p194 = scmp.eq.s32.totalorder %s24, 7
      %p195 = por %p193, %p194
      %p196 = scmp.ne.s32.totalorder %s188, %s191
      %p197 = scmp.eq.s32.totalorder %s24, 0
      %p198 = por %p196, %p197
      %p199 = scmp.ne.s32.totalorder %s188, %s191
      %p200 = scmp.eq.s32.totalorder %s29, 7
      %p201 = por %p199, %p200
      %p202 = scmp.ne.s32.totalorder %s191, %s192
      %p203 = scmp.eq.s32.totalorder %s29, 0
      %p204 = por %p202, %p203
      %p205 = scmp.ne.s32.totalorder %s191, %s192
      %p206 = scmp.eq.s32.totalorder %s30, 7
      %p207 = por %p205, %p206
      %p209 = scmp.ne.s32.totalorder %s192, %s208
      %p210 = scmp.eq.s32.totalorder %s30, 0
      %p211 = por %p209, %p210
      %p212 = scmp.le.s32.totalorder 1, %s24
      %p213 = scmp.lt.s32.totalorder %s24, 9
      %p214 = pnand %p212, %p213
      %p215 = pneg %p214
      // Predicated region
      $region9: #{tpu_custom_call.1} parent=5 // pred_check
        _
      $region10: #{tpu_custom_call.1} parent=5 // pred_check_branch
        %217 = sbr.rel (%p214) target = $region12
      $region11: #{tpu_custom_call.1} parent=5 // pred_region
        %s218 = ssub.s32 %s24, 1
        // Predicated region
        $region13: #{tpu_custom_call.1} parent=11 // pred_check
          %p219 = pneg %p176
        $region14: #{tpu_custom_call.1} parent=11 // pred_check_branch
          %221 = sbr.rel (%p219) target = $region16
        $region15: #{tpu_custom_call.1} parent=11 // pred_region
          _
        $region16: #{tpu_custom_call.1} parent=11 // pred_fallthru
          _
      $region12: #{tpu_custom_call.1} parent=5 // pred_fallthru
        _
      %p222 = scmp.lt.s32.totalorder %s24, 8
      // Predicated region
      $region17: #{tpu_custom_call.1} parent=5 // pred_check
        %p223 = pneg %p222
      $region18: #{tpu_custom_call.1} parent=5 // pred_check_branch
        %225 = sbr.rel (%p223) target = $region20
      $region19: #{tpu_custom_call.1} parent=5 // pred_region
        // Predicated region
        $region21: #{tpu_custom_call.1} parent=19 // pred_check
          %p226 = pneg %p65
        $region22: #{tpu_custom_call.1} parent=19 // pred_check_branch
          %228 = sbr.rel (%p226) target = $region24
        $region23: #{tpu_custom_call.1} parent=19 // pred_region
          %s229 = sand.u32 %s55, 1
          %s230 = scalar_lea.sflag [#allocation6], %s229
          %s231 = sand.u32 %s55, 1
          %s232 = smul.addr %s231, 8
          %s233 = scalar_lea.vmem [#allocation5], %s232
          %s235 = ssub.s32 128, 128
          %236 = vsyncadd %s230, %s235
          %s237 = smul.addr %s31, 4
          %s238 = sadd.s32 %s32, %s237
          %s239 = smul.addr %s238, 64
          %s240 = scalar_lea.hbm %s0, %s239
          %s241 = sshll.u32 %s233, 4
          %s242 = int_to_ptr.vmem [resolvable:$true] %s241
          %247 = dma.hbm_to_vmem [thread:$0]  %s240, 128, %s242, %s230, 128, 64, 4
        $region24: #{tpu_custom_call.1} parent=19 // pred_fallthru
          _
        // Predicated region
        $region25: #{tpu_custom_call.1} parent=19 // pred_check
          %p248 = pneg %p93
        $region26: #{tpu_custom_call.1} parent=19 // pred_check_branch
          %250 = sbr.rel (%p248) target = $region28
        $region27: #{tpu_custom_call.1} parent=19 // pred_region
          %s251 = sand.u32 %s24, 1
          %s252 = scalar_lea.sflag [#allocation9], %s251
          %s253 = sand.u32 %s83, 1
          %s254 = smul.addr %s253, 8
          %s255 = scalar_lea.vmem [#allocation8], %s254
          %s257 = ssub.s32 128, 128
          %258 = vsyncadd %s252, %s257
          %s259 = smul.addr %s31, 4
          %s260 = sadd.s32 %s33, %s259
          %s261 = smul.addr %s260, 64
          %s262 = scalar_lea.hbm %s1, %s261
          %s263 = sshll.u32 %s255, 4
          %s264 = int_to_ptr.vmem [resolvable:$true] %s263
          %269 = dma.hbm_to_vmem [thread:$0]  %s262, 128, %s264, %s252, 128, 64, 4
        $region28: #{tpu_custom_call.1} parent=19 // pred_fallthru
          _
        // Predicated region
        $region29: #{tpu_custom_call.1} parent=19 // pred_check
          %p270 = pneg %p121
        $region30: #{tpu_custom_call.1} parent=19 // pred_check_branch
          %272 = sbr.rel (%p270) target = $region32
        $region31: #{tpu_custom_call.1} parent=19 // pred_region
          %s273 = sand.u32 %s24, 1
          %s274 = scalar_lea.sflag [#allocation9], %s273
          %s275 = sand.u32 %s111, 1
          %s276 = smul.addr %s275, 40
          %s277 = scalar_lea.vmem [#allocation10], %s276
          %s279 = ssub.s32 640, 640
          %280 = vsyncadd %s274, %s279
          %s281 = smul.addr %s31, 20
          %s282 = sadd.s32 %s33, %s281
          %s283 = smul.addr %s282, 64
          %s284 = scalar_lea.hbm %s2, %s283
          %s285 = sshll.u32 %s277, 4
          %s286 = int_to_ptr.vmem [resolvable:$true] %s285
          %291 = dma.hbm_to_vmem [thread:$0]  %s284, 640, %s286, %s274, 128, 64, 4
        $region32: #{tpu_custom_call.1} parent=19 // pred_fallthru
          _
        // Predicated region
        $region33: #{tpu_custom_call.1} parent=19 // pred_check
          %p292 = pneg %p149
        $region34: #{tpu_custom_call.1} parent=19 // pred_check_branch
          %294 = sbr.rel (%p292) target = $region36
        $region35: #{tpu_custom_call.1} parent=19 // pred_region
          %s295 = sand.u32 %s139, 1
          %s296 = scalar_lea.sflag [#allocation12], %s295
          %s297 = sand.u32 %s139, 1
          %s298 = smul.addr %s297, 64
          %s299 = scalar_lea.vmem [#allocation11], %s298
          %s301 = ssub.s32 1024, 1024
          %302 = vsyncadd %s296, %s301
          %s303 = smul.addr %s31, 16
          %s304 = sadd.s32 %s32, %s303
          %s305 = smul.addr %s304, 128
          %s306 = scalar_lea.hbm %s3, %s305
          %s307 = sshll.u32 %s299, 4
          %s308 = int_to_ptr.vmem [resolvable:$true] %s307
          %313 = dma.hbm_to_vmem [thread:$0]  %s306, 1024, %s308, %s296, 256, 128, 8
        $region36: #{tpu_custom_call.1} parent=19 // pred_fallthru
          _
      $region20: #{tpu_custom_call.1} parent=5 // pred_fallthru
        _
      %p314 = scmp.le.s32.totalorder 1, %s24
      %p315 = scmp.lt.s32.totalorder %s24, 9
      %p316 = pnand %p314, %p315
      %p317 = pneg %p316
      // Predicated region
      $region37: #{tpu_custom_call.1} parent=5 // pred_check
        _
      $region38: #{tpu_custom_call.1} parent=5 // pred_check_branch
        %319 = sbr.rel (%p316) target = $region40
      $region39: #{tpu_custom_call.1} parent=5 // pred_region
        %s320 = ssub.s32 %s24, 1
        %s321 = sand.u32 %s58, 1
        %s322 = scalar_lea.sflag [#allocation6], %s321
        %s323 = sand.u32 %s58, 1
        %s324 = smul.addr %s323, 8
        %s325 = scalar_lea.vmem [#allocation5], %s324
        // Predicated region
        $region41: #{tpu_custom_call.1} parent=39 // pred_check
          %p326 = pneg %p71
        $region42: #{tpu_custom_call.1} parent=39 // pred_check_branch
          %328 = sbr.rel (%p326) target = $region44
        $region43: #{tpu_custom_call.1} parent=39 // pred_region
          %329 = dma.done %s322, 128
        $region44: #{tpu_custom_call.1} parent=39 // pred_fallthru
          _
        %s330 = sand.u32 %s29, 1
        %s331 = scalar_lea.sflag [#allocation9], %s330
        %s332 = sand.u32 %s86, 1
        %s333 = smul.addr %s332, 8
        %s334 = scalar_lea.vmem [#allocation8], %s333
        // Predicated region
        $region45: #{tpu_custom_call.1} parent=39 // pred_check
          %p335 = pneg %p99
        $region46: #{tpu_custom_call.1} parent=39 // pred_check_branch
          %337 = sbr.rel (%p335) target = $region48
        $region47: #{tpu_custom_call.1} parent=39 // pred_region
          %338 = dma.done %s331, 128
        $region48: #{tpu_custom_call.1} parent=39 // pred_fallthru
          _
        %s339 = sand.u32 %s29, 1
        %s340 = scalar_lea.sflag [#allocation9], %s339
        %s341 = sand.u32 %s114, 1
        %s342 = smul.addr %s341, 40
        %s343 = scalar_lea.vmem [#allocation10], %s342
        // Predicated region
        $region49: #{tpu_custom_call.1} parent=39 // pred_check
          %p344 = pneg %p127
        $region50: #{tpu_custom_call.1} parent=39 // pred_check_branch
          %346 = sbr.rel (%p344) target = $region52
        $region51: #{tpu_custom_call.1} parent=39 // pred_region
          %347 = dma.done %s340, 640
        $region52: #{tpu_custom_call.1} parent=39 // pred_fallthru
          _
        %s348 = sand.u32 %s142, 1
        %s349 = scalar_lea.sflag [#allocation12], %s348
        %s350 = sand.u32 %s142, 1
        %s351 = smul.addr %s350, 64
        %s352 = scalar_lea.vmem [#allocation11], %s351
        // Predicated region
        $region53: #{tpu_custom_call.1} parent=39 // pred_check
          %p353 = pneg %p155
        $region54: #{tpu_custom_call.1} parent=39 // pred_check_branch
          %355 = sbr.rel (%p353) target = $region56
        $region55: #{tpu_custom_call.1} parent=39 // pred_region
          %356 = dma.done %s349, 1024
        $region56: #{tpu_custom_call.1} parent=39 // pred_fallthru
          _
        %s357 = sand.u32 %s58, 1
        %s358 = scalar_lea.sflag [#allocation6], %s357
        %s359 = sand.u32 %s58, 1
        %s360 = smul.addr %s359, 8
        %s361 = scalar_lea.vmem [#allocation5], %s360
        %p362 = pneg %p71
        %p363 = pneg %p68
        %s364 = sand.u32 %s29, 1
        %s365 = scalar_lea.sflag [#allocation9], %s364
        %s366 = sand.u32 %s86, 1
        %s367 = smul.addr %s366, 8
        %s368 = scalar_lea.vmem [#allocation8], %s367
        %p369 = pneg %p99
        %p370 = pneg %p96
        %s371 = sand.u32 %s29, 1
        %s372 = scalar_lea.sflag [#allocation9], %s371
        %s373 = sand.u32 %s114, 1
        %s374 = smul.addr %s373, 40
        %s375 = scalar_lea.vmem [#allocation10], %s374
        %p376 = pneg %p127
        %p377 = pneg %p124
        %s378 = sand.u32 %s142, 1
        %s379 = scalar_lea.sflag [#allocation12], %s378
        %s380 = sand.u32 %s142, 1
        %s381 = smul.addr %s380, 64
        %s382 = scalar_lea.vmem [#allocation11], %s381
        %p383 = pneg %p155
        %p384 = pneg %p152
        %p385 = pneg %p176
        %p386 = pneg %p173
        %p387 = pneg %p204
        %p388 = pneg %p201
        %s389 = sand.u32 %s191, 1
        %s390 = scalar_lea.sflag [#allocation7], %s389
        %s391 = sand.u32 %s191, 1
        %s392 = smul.addr %s391, 64
        %s393 = scalar_lea.vmem [#allocation13], %s392
        %p395 = scmp.eq.s32.totalorder %s36, 0
        // Predicated region
        $region57: #{tpu_custom_call.1} parent=39 // pred_check
          %p396 = pneg %p395
        $region58: #{tpu_custom_call.1} parent=39 // pred_check_branch
          %398 = sbr.rel (%p396) target = $region60
        $region59: #{tpu_custom_call.1} parent=39 // pred_region
          %399 = vst [vmem:[#allocation2] sm:$0x1] -inf
          %400 = vst [vmem:[#allocation3] sm:$0xff] 0.0
          %401 = vst [vmem:[#allocation3 + $0x8] sm:$0xff] 0.0
          %402 = vst [vmem:[#allocation3 + $0x10] sm:$0xff] 0.0
          %403 = vst [vmem:[#allocation3 + $0x18] sm:$0xff] 0.0
          %404 = vst [vmem:[#allocation3 + $0x20] sm:$0xff] 0.0
          %405 = vst [vmem:[#allocation3 + $0x28] sm:$0xff] 0.0
          %406 = vst [vmem:[#allocation3 + $0x30] sm:$0xff] 0.0
          %407 = vst [vmem:[#allocation3 + $0x38] sm:$0xff] 0.0
          %408 = vst [vmem:[#allocation3 + $0x40] sm:$0xff] 0.0
          %409 = vst [vmem:[#allocation3 + $0x48] sm:$0xff] 0.0
        $region60: #{tpu_custom_call.1} parent=39 // pred_fallthru
          _
        %v410 = vld [vmem:[%s325] sm:$0xf]
        %v411 = vld [vmem:[%s325 + $0x4] sm:$0xf]
        %v412 = vld [vmem:[%s334] sm:$0xf]
        %v413 = vld [vmem:[%s334 + $0x4] sm:$0xf]
        %v414 = vld [vmem:[%s343] sm:$0xf]
        %v415 = vld [vmem:[%s343 + $0x4] sm:$0xf]
        %v416 = vld [vmem:[%s343 + $0x8] sm:$0xf]
        %v417 = vld [vmem:[%s343 + $0xc] sm:$0xf]
        %v418 = vld [vmem:[%s343 + $0x10] sm:$0xf]
        %v419 = vld [vmem:[%s343 + $0x14] sm:$0xf]
        %v420 = vld [vmem:[%s343 + $0x18] sm:$0xf]
        %v421 = vld [vmem:[%s343 + $0x1c] sm:$0xf]
        %v422 = vld [vmem:[%s343 + $0x20] sm:$0xf]
        %v423 = vld [vmem:[%s343 + $0x24] sm:$0xf]
        %v426 = vunpack.c.l.b16 %v412
        %v427 = vunpack.c.l.b16 %v413
        %v428 = vpack.c.b16 %v427, %v426
        %430 = vxpose.xlu0.c.b16.start [1/8] %v428, 128
        %431 = vxpose.xlu0.c.b16.cont [2/8] 0, 128
        %432 = vxpose.xlu0.c.b16.cont [3/8] 0, 128
        %433 = vxpose.xlu0.c.b16.cont [4/8] 0, 128
        %434 = vxpose.xlu0.c.b16.cont [5/8] 0, 128
        %435 = vxpose.xlu0.c.b16.cont [6/8] 0, 128
        %436 = vxpose.xlu0.c.b16.cont [7/8] 0, 128
        %437 = vxpose.xlu0.c.b16.end [8/8] 0, 128
        %v438 = vpop.trf.xlu0
        %v439 = vpop.trf.xlu0
        %v440 = vpop.trf.xlu0
        %v441 = vpop.trf.xlu0
        %v442 = vpop.trf.xlu0
        %v443 = vpop.trf.xlu0
        %v444 = vpop.trf.xlu0
        %v445 = vpop.trf.xlu0
        %v448 = vunpack.c.l.b16 %v410
        %v449 = vunpack.c.l.b16 %v411
        %v450 = vpack.c.b16 %v449, %v448
        %vm452 = vcmask 130048
        %v454 = vsel %vm452, %v438, 0
        %v457 = vsel %vm452, %v439, 0
        %v460 = vsel %vm452, %v440, 0
        %v463 = vsel %vm452, %v441, 0
        %v466 = vsel %vm452, %v442, 0
        %v469 = vsel %vm452, %v443, 0
        %v472 = vsel %vm452, %v444, 0
        %v475 = vsel %vm452, %v445, 0
        %477 = vmatprep.subr.bf16.mxu0 0
        %478 = vmatpush1.bf16.msra.mxu0 %v450
        %479 = vmatprep.subr.bf16.mxu0 0
        %480 = vmatpush1.bf16.msra.mxu0 0
        %481 = vmatprep.subr.bf16.mxu0 0
        %482 = vmatpush1.bf16.msra.mxu0 0
        %483 = vmatprep.subr.bf16.mxu0 0
        %484 = vmatpush1.bf16.msra.mxu0 0
        %485 = vmatprep.subr.bf16.mxu0 0
        %486 = vmatpush1.bf16.msra.mxu0 0
        %487 = vmatprep.subr.bf16.mxu0 0
        %488 = vmatpush1.bf16.msra.mxu0 0
        %489 = vmatprep.subr.bf16.mxu0 0
        %490 = vmatpush1.bf16.msra.mxu0 0
        %491 = vmatprep.subr.bf16.mxu0 0
        %492 = vmatpush1.bf16.msra.mxu0 0
        %493 = vmatprep.subr.bf16.mxu0 0
        %494 = vmatpush1.bf16.msra.mxu0 0
        %495 = vmatprep.subr.bf16.mxu0 0
        %496 = vmatpush1.bf16.msra.mxu0 0
        %497 = vmatprep.subr.bf16.mxu0 0
        %498 = vmatpush1.bf16.msra.mxu0 0
        %499 = vmatprep.subr.bf16.mxu0 0
        %500 = vmatpush1.bf16.msra.mxu0 0
        %501 = vmatprep.subr.bf16.mxu0 0
        %502 = vmatpush1.bf16.msra.mxu0 0
        %503 = vmatprep.subr.bf16.mxu0 0
        %504 = vmatpush1.bf16.msra.mxu0 0
        %505 = vmatprep.subr.bf16.mxu0 0
        %506 = vmatpush1.bf16.msra.mxu0 0
        %507 = vmatprep.subr.bf16.mxu0 0
        %508 = vmatpush1.bf16.msra.mxu0 0
        %509 = vmatprep.mubr.bf16.mxu0 0
        %510 = vmatmul.mubr.bf16.gmra.mrb[0].mxu0 %v454
        %v511 = vpop.f32.mrb[0].mxu0
        %v512 = vadd.f32 0.0, %v511
        %v513 = vpop.f32.mrb[0].mxu0
        %v514 = vpop.f32.mrb[0].mxu0
        %v515 = vadd.f32 0.0, %v514
        %v516 = vpop.f32.mrb[0].mxu0
        %517 = vmatprep.mubr.bf16.mxu0 0
        %518 = vmatmul.mubr.bf16.gmra.mrb[0].mxu0 %v457
        %v519 = vpop.f32.mrb[0].mxu0
        %v520 = vadd.f32 0.0, %v519
        %v521 = vpop.f32.mrb[0].mxu0
        %v522 = vpop.f32.mrb[0].mxu0
        %v523 = vadd.f32 0.0, %v522
        %v524 = vpop.f32.mrb[0].mxu0
        %525 = vmatprep.mubr.bf16.mxu0 0
        %526 = vmatmul.mubr.bf16.gmra.mrb[0].mxu0 %v460
        %v527 = vpop.f32.mrb[0].mxu0
        %v528 = vadd.f32 0.0, %v527
        %v529 = vpop.f32.mrb[0].mxu0
        %v530 = vpop.f32.mrb[0].mxu0
        %v531 = vadd.f32 0.0, %v530
        %v532 = vpop.f32.mrb[0].mxu0
        %533 = vmatprep.mubr.bf16.mxu0 0
        %534 = vmatmul.mubr.bf16.gmra.mrb[0].mxu0 %v463
        %v535 = vpop.f32.mrb[0].mxu0
        %v536 = vadd.f32 0.0, %v535
        %v537 = vpop.f32.mrb[0].mxu0
        %v538 = vpop.f32.mrb[0].mxu0
        %v539 = vadd.f32 0.0, %v538
        %v540 = vpop.f32.mrb[0].mxu0
        %541 = vmatprep.mubr.bf16.mxu0 0
        %542 = vmatmul.mubr.bf16.gmra.mrb[0].mxu0 %v466
        %v543 = vpop.f32.mrb[0].mxu0
        %v544 = vadd.f32 0.0, %v543
        %v545 = vpop.f32.mrb[0].mxu0
        %v546 = vpop.f32.mrb[0].mxu0
        %v547 = vadd.f32 0.0, %v546
        %v548 = vpop.f32.mrb[0].mxu0
        %549 = vmatprep.mubr.bf16.mxu0 0
        %550 = vmatmul.mubr.bf16.gmra.mrb[0].mxu0 %v469
        %v551 = vpop.f32.mrb[0].mxu0
        %v552 = vadd.f32 0.0, %v551
        %v553 = vpop.f32.mrb[0].mxu0
        %v554 = vpop.f32.mrb[0].mxu0
        %v555 = vadd.f32 0.0, %v554
        %v556 = vpop.f32.mrb[0].mxu0
        %557 = vmatprep.mubr.bf16.mxu0 0
        %558 = vmatmul.mubr.bf16.gmra.mrb[0].mxu0 %v472
        %v559 = vpop.f32.mrb[0].mxu0
        %v560 = vadd.f32 0.0, %v559
        %v561 = vpop.f32.mrb[0].mxu0
        %v562 = vpop.f32.mrb[0].mxu0
        %v563 = vadd.f32 0.0, %v562
        %v564 = vpop.f32.mrb[0].mxu0
        %565 = vmatprep.mubr.bf16.mxu0 0
        %566 = vmatmul.mubr.bf16.gmra.mrb[0].mxu0 %v475
        %v567 = vpop.f32.mrb[0].mxu0
        %v568 = vadd.f32 0.0, %v567
        %v569 = vpop.f32.mrb[0].mxu0
        %v570 = vpop.f32.mrb[0].mxu0
        %v571 = vadd.f32 0.0, %v570
        %v572 = vpop.f32.mrb[0].mxu0
        %573 = vdwg.mxu0
        %v574 = vld [vmem:[#allocation2] sm:$0x1]
        %v575 = vmax.f32 %v512, %v528
        %v576 = vmax.f32 %v515, %v531
        %v577 = vmax.f32 %v520, %v536
        %v578 = vmax.f32 %v523, %v539
        %v579 = vmax.f32 %v575, %v544
        %v580 = vmax.f32 %v576, %v547
        %v581 = vmax.f32 %v577, %v552
        %v582 = vmax.f32 %v578, %v555
        %v583 = vmax.f32 %v579, %v560
        %v584 = vmax.f32 %v580, %v563
        %v585 = vmax.f32 %v581, %v568
        %v586 = vmax.f32 %v582, %v571
        %v587 = vmax.f32 %v583, %v584
        %v588 = vmax.f32 %v585, %v586
        %v589 = vmax.f32 %v587, %v588
        %v590 = vrot.slane %v589, 4
        %v591 = vmax.f32 %v589, %v590
        %v592 = vrot.slane %v591, 2
        %v593 = vmax.f32 %v591, %v592
        %v594 = vrot.slane %v593, 1
        %v595 = vmax.f32 %v593, %v594
        %v596 = vmax.f32 %v574, %v595
        %v597 = vsub.f32 %v574, %v596
        %v598 = vmul.f32 %v597, 1.442695
        %v599 = vpow.pop %v598
        %v601 = vlaneseq
        %v602 = vshrl.u32 %v601, 7
        %v603 = vsub.s32 0, %v602
        %v604 = vrot.slane %v596, %v603
        %v606 = vsub.f32 %v512, %v604
        %v607 = vsub.f32 %v515, %v604
        %v608 = vsub.f32 %v520, %v604
        %v609 = vsub.f32 %v523, %v604
        %v610 = vsub.f32 %v528, %v604
        %v611 = vsub.f32 %v531, %v604
        %v612 = vsub.f32 %v536, %v604
        %v613 = vsub.f32 %v539, %v604
        %v614 = vsub.f32 %v544, %v604
        %v615 = vsub.f32 %v547, %v604
        %v616 = vsub.f32 %v552, %v604
        %v617 = vsub.f32 %v555, %v604
        %v618 = vsub.f32 %v560, %v604
        %v619 = vsub.f32 %v563, %v604
        %v620 = vsub.f32 %v568, %v604
        %v621 = vsub.f32 %v571, %v604
        %v622 = vpack.c.bf16 %v607, %v606
        %v623 = vpack.c.bf16 %v609, %v608
        %v624 = vpack.c.bf16 %v611, %v610
        %v625 = vpack.c.bf16 %v613, %v612
        %v626 = vpack.c.bf16 %v615, %v614
        %v627 = vpack.c.bf16 %v617, %v616
        %v628 = vpack.c.bf16 %v619, %v618
        %v629 = vpack.c.bf16 %v621, %v620
        %v631 = vmul.bf16 %v622, 1069105081
        %v632 = vpow.bf16.pop %v631
        %v634 = vmul.bf16 %v623, 1069105081
        %v635 = vpow.bf16.pop %v634
        %v637 = vmul.bf16 %v624, 1069105081
        %v638 = vpow.bf16.pop %v637
        %v640 = vmul.bf16 %v625, 1069105081
        %v641 = vpow.bf16.pop %v640
        %v643 = vmul.bf16 %v626, 1069105081
        %v644 = vpow.bf16.pop %v643
        %v646 = vmul.bf16 %v627, 1069105081
        %v647 = vpow.bf16.pop %v646
        %v649 = vmul.bf16 %v628, 1069105081
        %v650 = vpow.bf16.pop %v649
        %v652 = vmul.bf16 %v629, 1069105081
        %v653 = vpow.bf16.pop %v652
        %v664 = vunpack.c.l.b16 %v414
        %v665 = vunpack.c.l.b16 %v415
        %v666 = vunpack.c.l.b16 %v416
        %v667 = vunpack.c.l.b16 %v417
        %v668 = vunpack.c.l.b16 %v418
        %v669 = vunpack.c.l.b16 %v419
        %v670 = vunpack.c.l.b16 %v420
        %v671 = vunpack.c.l.b16 %v421
        %v672 = vunpack.c.l.b16 %v422
        %v673 = vunpack.c.l.b16 %v423
        %v674 = vpack.c.b16 %v665, %v664
        %v675 = vpack.c.b16 %v667, %v666
        %v676 = vpack.c.b16 %v669, %v668
        %v677 = vpack.c.b16 %v671, %v670
        %v678 = vpack.c.b16 %v673, %v672
        %684 = vmatprep.subr.bf16.mxu0 0
        %685 = vmatpush1.bf16.msra.mxu0 %v632
        %686 = vmatprep.subr.bf16.mxu0 0
        %687 = vmatpush1.bf16.msra.mxu0 %v635
        %688 = vmatprep.subr.bf16.mxu0 0
        %689 = vmatpush1.bf16.msra.mxu0 %v638
        %690 = vmatprep.subr.bf16.mxu0 0
        %691 = vmatpush1.bf16.msra.mxu0 %v641
        %692 = vmatprep.subr.bf16.mxu0 0
        %693 = vmatpush1.bf16.msra.mxu0 %v644
        %694 = vmatprep.subr.bf16.mxu0 0
        %695 = vmatpush1.bf16.msra.mxu0 %v647
        %696 = vmatprep.subr.bf16.mxu0 0
        %697 = vmatpush1.bf16.msra.mxu0 %v650
        %698 = vmatprep.subr.bf16.mxu0 0
        %699 = vmatpush1.bf16.msra.mxu0 %v653
        %700 = vmatprep.subr.bf16.mxu0 0
        %701 = vmatpush1.bf16.msra.mxu0 0
        %702 = vmatprep.subr.bf16.mxu0 0
        %703 = vmatpush1.bf16.msra.mxu0 0
        %704 = vmatprep.subr.bf16.mxu0 0
        %705 = vmatpush1.bf16.msra.mxu0 0
        %706 = vmatprep.subr.bf16.mxu0 0
        %707 = vmatpush1.bf16.msra.mxu0 0
        %708 = vmatprep.subr.bf16.mxu0 0
        %709 = vmatpush1.bf16.msra.mxu0 0
        %710 = vmatprep.subr.bf16.mxu0 0
        %711 = vmatpush1.bf16.msra.mxu0 0
        %712 = vmatprep.subr.bf16.mxu0 0
        %713 = vmatpush1.bf16.msra.mxu0 0
        %714 = vmatprep.subr.bf16.mxu0 0
        %715 = vmatpush1.bf16.msra.mxu0 0
        %716 = vmatprep.mubr.bf16.mxu0 0
        %717 = vmatmul.mubr.bf16.gmra.mrb[0].mxu0 %v674
        %v718 = vpop.f32.mrb[0].mxu0
        %v719 = vadd.f32 0.0, %v718
        %v720 = vpop.f32.mrb[0].mxu0
        %v721 = vpop.f32.mrb[0].mxu0
        %v722 = vadd.f32 0.0, %v721
        %v723 = vpop.f32.mrb[0].mxu0
        %724 = vmatprep.mubr.bf16.mxu0 0
        %725 = vmatmul.mubr.bf16.gmra.mrb[0].mxu0 %v675
        %v726 = vpop.f32.mrb[0].mxu0
        %v727 = vadd.f32 0.0, %v726
        %v728 = vpop.f32.mrb[0].mxu0
        %v729 = vpop.f32.mrb[0].mxu0
        %v730 = vadd.f32 0.0, %v729
        %v731 = vpop.f32.mrb[0].mxu0
        %732 = vmatprep.mubr.bf16.mxu0 0
        %733 = vmatmul.mubr.bf16.gmra.mrb[0].mxu0 %v676
        %v734 = vpop.f32.mrb[0].mxu0
        %v735 = vadd.f32 0.0, %v734
        %v736 = vpop.f32.mrb[0].mxu0
        %v737 = vpop.f32.mrb[0].mxu0
        %v738 = vadd.f32 0.0, %v737
        %v739 = vpop.f32.mrb[0].mxu0
        %740 = vmatprep.mubr.bf16.mxu0 0
        %741 = vmatmul.mubr.bf16.gmra.mrb[0].mxu0 %v677
        %v742 = vpop.f32.mrb[0].mxu0
        %v743 = vadd.f32 0.0, %v742
        %v744 = vpop.f32.mrb[0].mxu0
        %v745 = vpop.f32.mrb[0].mxu0
        %v746 = vadd.f32 0.0, %v745
        %v747 = vpop.f32.mrb[0].mxu0
        %748 = vmatprep.mubr.bf16.mxu0 0
        %749 = vmatmul.mubr.bf16.gmra.mrb[0].mxu0 %v678
        %v750 = vpop.f32.mrb[0].mxu0
        %v751 = vadd.f32 0.0, %v750
        %v752 = vpop.f32.mrb[0].mxu0
        %v753 = vpop.f32.mrb[0].mxu0
        %v754 = vadd.f32 0.0, %v753
        %v755 = vpop.f32.mrb[0].mxu0
        %756 = vdwg.mxu0
        %v757 = vld [vmem:[#allocation3] sm:$0xff]
        %v758 = vld [vmem:[#allocation3 + $0x8] sm:$0xff]
        %v759 = vld [vmem:[#allocation3 + $0x10] sm:$0xff]
        %v760 = vld [vmem:[#allocation3 + $0x18] sm:$0xff]
        %v761 = vld [vmem:[#allocation3 + $0x20] sm:$0xff]
        %v762 = vld [vmem:[#allocation3 + $0x28] sm:$0xff]
        %v763 = vld [vmem:[#allocation3 + $0x30] sm:$0xff]
        %v764 = vld [vmem:[#allocation3 + $0x38] sm:$0xff]
        %v765 = vld [vmem:[#allocation3 + $0x40] sm:$0xff]
        %v766 = vld [vmem:[#allocation3 + $0x48] sm:$0xff]
        %v768 = vlaneseq
        %v769 = vshrl.u32 %v768, 7
        %v770 = vsub.s32 0, %v769
        %v771 = vrot.slane %v599, %v770
        %v773 = vmul.f32 %v771, %v757
        %v774 = vmul.f32 %v771, %v758
        %v775 = vmul.f32 %v771, %v759
        %v776 = vmul.f32 %v771, %v760
        %v777 = vmul.f32 %v771, %v761
        %v778 = vmul.f32 %v771, %v762
        %v779 = vmul.f32 %v771, %v763
        %v780 = vmul.f32 %v771, %v764
        %v781 = vmul.f32 %v771, %v765
        %v782 = vmul.f32 %v771, %v766
        %v783 = vadd.f32 %v773, %v719
        %v784 = vadd.f32 %v774, %v722
        %v785 = vadd.f32 %v775, %v727
        %v786 = vadd.f32 %v776, %v730
        %v787 = vadd.f32 %v777, %v735
        %v788 = vadd.f32 %v778, %v738
        %v789 = vadd.f32 %v779, %v743
        %v790 = vadd.f32 %v780, %v746
        %v791 = vadd.f32 %v781, %v751
        %v792 = vadd.f32 %v782, %v754
        %793 = vst [vmem:[#allocation3] sm:$0xff] %v783
        %794 = vst [vmem:[#allocation3 + $0x8] sm:$0xff] %v784
        %795 = vst [vmem:[#allocation3 + $0x10] sm:$0xff] %v785
        %796 = vst [vmem:[#allocation3 + $0x18] sm:$0xff] %v786
        %797 = vst [vmem:[#allocation3 + $0x20] sm:$0xff] %v787
        %798 = vst [vmem:[#allocation3 + $0x28] sm:$0xff] %v788
        %799 = vst [vmem:[#allocation3 + $0x30] sm:$0xff] %v789
        %800 = vst [vmem:[#allocation3 + $0x38] sm:$0xff] %v790
        %801 = vst [vmem:[#allocation3 + $0x40] sm:$0xff] %v791
        %802 = vst [vmem:[#allocation3 + $0x48] sm:$0xff] %v792
        %803 = vst [vmem:[#allocation2] sm:$0x1] %v596
        %p804 = scmp.eq.s32.totalorder %s36, 1
        // Predicated region
        $region61: #{tpu_custom_call.1} parent=39 // pred_check
          %p805 = pneg %p804
        $region62: #{tpu_custom_call.1} parent=39 // pred_check_branch
          %807 = sbr.rel (%p805) target = $region64
        $region63: #{tpu_custom_call.1} parent=39 // pred_region
          %v808 = vld [vmem:[#allocation3 + $0x40] sm:$0x1]
          %v809 = vrcp.pop %v808
          %s810 = sld [smem:[#allocation4]]
          %v811 = vld [vmem:[#allocation3] sm:$0xff]
          %v812 = vld [vmem:[#allocation3 + $0x8] sm:$0xff]
          %v813 = vld [vmem:[#allocation3 + $0x10] sm:$0xff]
          %v814 = vld [vmem:[#allocation3 + $0x18] sm:$0xff]
          %v815 = vld [vmem:[#allocation3 + $0x20] sm:$0xff]
          %v816 = vld [vmem:[#allocation3 + $0x28] sm:$0xff]
          %v817 = vld [vmem:[#allocation3 + $0x30] sm:$0xff]
          %v818 = vld [vmem:[#allocation3 + $0x38] sm:$0xff]
          %v819 = vlaneseq
          %v820 = vshrl.u32 %v819, 7
          %v821 = vsub.s32 0, %v820
          %v822 = vrot.slane %v809, %v821
          %v823 = vmul.f32 %v811, %v822
          %v824 = vmul.f32 %v812, %v822
          %v825 = vmul.f32 %v813, %v822
          %v826 = vmul.f32 %v814, %v822
          %v827 = vmul.f32 %v815, %v822
          %v828 = vmul.f32 %v816, %v822
          %v829 = vmul.f32 %v817, %v822
          %v830 = vmul.f32 %v818, %v822
          %v831 = vstv %s810
          %v832 = vmul.f32 %v831, %v823
          %v833 = vmul.f32 %v831, %v824
          %v834 = vmul.f32 %v831, %v825
          %v835 = vmul.f32 %v831, %v826
          %v836 = vmul.f32 %v831, %v827
          %v837 = vmul.f32 %v831, %v828
          %v838 = vmul.f32 %v831, %v829
          %v839 = vmul.f32 %v831, %v830
          %v840 = vld [vmem:[%s352] sm:$0xff]
          %v841 = vld [vmem:[%s352 + $0x8] sm:$0xff]
          %v842 = vld [vmem:[%s352 + $0x10] sm:$0xff]
          %v843 = vld [vmem:[%s352 + $0x18] sm:$0xff]
          %v844 = vld [vmem:[%s352 + $0x20] sm:$0xff]
          %v845 = vld [vmem:[%s352 + $0x28] sm:$0xff]
          %v846 = vld [vmem:[%s352 + $0x30] sm:$0xff]
          %v847 = vld [vmem:[%s352 + $0x38] sm:$0xff]
          %v848 = vadd.f32 %v832, %v840
          %v849 = vadd.f32 %v833, %v841
          %v850 = vadd.f32 %v834, %v842
          %v851 = vadd.f32 %v835, %v843
          %v852 = vadd.f32 %v836, %v844
          %v853 = vadd.f32 %v837, %v845
          %v854 = vadd.f32 %v838, %v846
          %v855 = vadd.f32 %v839, %v847
          %856 = vst [vmem:[%s393] sm:$0xff] %v848
          %857 = vst [vmem:[%s393 + $0x8] sm:$0xff] %v849
          %858 = vst [vmem:[%s393 + $0x10] sm:$0xff] %v850
          %859 = vst [vmem:[%s393 + $0x18] sm:$0xff] %v851
          %860 = vst [vmem:[%s393 + $0x20] sm:$0xff] %v852
          %861 = vst [vmem:[%s393 + $0x28] sm:$0xff] %v853
          %862 = vst [vmem:[%s393 + $0x30] sm:$0xff] %v854
          %863 = vst [vmem:[%s393 + $0x38] sm:$0xff] %v855
        $region64: #{tpu_custom_call.1} parent=39 // pred_fallthru
          _
        %s864 = sand.u32 %s191, 1
        %s865 = scalar_lea.sflag [#allocation7], %s864
        %s866 = sand.u32 %s191, 1
        %s867 = smul.addr %s866, 64
        %s868 = scalar_lea.vmem [#allocation13], %s867
        // Predicated region
        $region65: #{tpu_custom_call.1} parent=39 // pred_check
          %p869 = pneg %p201
        $region66: #{tpu_custom_call.1} parent=39 // pred_check_branch
          %871 = sbr.rel (%p869) target = $region68
        $region67: #{tpu_custom_call.1} parent=39 // pred_region
          %s873 = ssub.s32 1024, 1024
          %874 = vsyncadd %s865, %s873
          %s875 = smul.addr %s34, 16
          %s876 = sadd.s32 %s35, %s875
          %s877 = smul.addr %s876, 128
          %s878 = scalar_lea.hbm %s5, %s877
          %s879 = sshll.u32 %s868, 4
          %s880 = int_to_ptr.vmem [resolvable:$true] %s879
          %885 = dma.vmem_to_hbm [thread:$0]  %s880, 1024, %s878, %s865, 128, 256, 8
        $region68: #{tpu_custom_call.1} parent=39 // pred_fallthru
          _
      $region40: #{tpu_custom_call.1} parent=5 // pred_fallthru
        _
      %p886 = scmp.le.s32.totalorder 2, %s24
      // Predicated region
      $region69: #{tpu_custom_call.1} parent=5 // pred_check
        %p887 = pneg %p886
      $region70: #{tpu_custom_call.1} parent=5 // pred_check_branch
        %889 = sbr.rel (%p887) target = $region72
      $region71: #{tpu_custom_call.1} parent=5 // pred_region
        %s890 = ssub.s32 %s24, 2
        // Predicated region
        $region73: #{tpu_custom_call.1} parent=71 // pred_check
          %p891 = pneg %p207
        $region74: #{tpu_custom_call.1} parent=71 // pred_check_branch
          %893 = sbr.rel (%p891) target = $region76
        $region75: #{tpu_custom_call.1} parent=71 // pred_region
          %s894 = sand.u32 %s192, 1
          %s895 = scalar_lea.sflag [#allocation7], %s894
          %s896 = sand.u32 %s192, 1
          %s897 = smul.addr %s896, 64
          %s898 = scalar_lea.vmem [#allocation13], %s897
          %899 = dma.done %s895, 1024
        $region76: #{tpu_custom_call.1} parent=71 // pred_fallthru
          _
      $region72: #{tpu_custom_call.1} parent=5 // pred_fallthru
        _
    $region6: #{tpu_custom_call.1} parent=1 // loop_footer
      %s28 = sadd.s32 1, %s24
    $region7: #{tpu_custom_call.1} parent=1 // loop_footer_branch
      %23 = sbr.rel target = $region3
    $region8: #{tpu_custom_call.1} parent=1 // loop_exit
      _
    %900 = vsyncpa [#allocation6], 1
    %s901 = scalar_lea.sflag [#allocation6], 1
    %902 = vsyncpa %s901, 1
    %903 = vsyncpa [#allocation9], 1
    %s904 = scalar_lea.sflag [#allocation9], 1
    %905 = vsyncpa %s904, 1
    %906 = vsyncpa [#allocation12], 1
    %s907 = scalar_lea.sflag [#allocation12], 1
    %908 = vsyncpa %s907, 1
    %909 = vsyncpa [#allocation7], 1
    %s910 = scalar_lea.sflag [#allocation7], 1
    %911 = vsyncpa %s910, 1

</llo_original>
